<compile_context>
chip_gen: v5e
topology: v5e:2x2
jax: 0.10.0
libtpu: 0.0.40
codegen_flags: <defaults>
</compile_context>

<pallas_src>
import jax
import jax.numpy as jnp
from jax import lax
from jax.experimental import pallas as pl
from jax.experimental.pallas import tpu as pltpu


# ------------------------------- Pallas kernel -------------------------------
def temporal_block_kernel(cols1a_ref, w_aug_ref, w2_ref, dsel_ref, ssq_ref,
                          sbr_ref, se_slab_ref, o_ref):
    co_pad = o_ref.shape[1]          # 128-lane padded channel width
    k_taps = w2_ref.shape[0]         # kernel_size

    # ---- fused conv1 + residual 1x1 conv (biases folded via the ones column) ----
    hr = jnp.dot(cols1a_ref[...], w_aug_ref[...],
                 preferred_element_type=jnp.float32)            # (NL, 2*CO_PAD)
    h1 = jnp.maximum(hr[:, :co_pad], 0.0)                       # conv1+chomp+ReLU
    res = hr[:, co_pad:]                                        # downsample(x)+bd
    # TODO(synk): training-mode dropout (p=0.2) omitted; inference semantics only.

    # ---- conv2 + chomp + ReLU: K accumulated matmuls; D_k = causal shift+mask ----
    acc = None
    for k in range(k_taps):
        shifted = jnp.dot(dsel_ref[k], h1, preferred_element_type=jnp.float32)
        term = jnp.dot(shifted, w2_ref[k], preferred_element_type=jnp.float32)
        acc = term if acc is None else acc + term
    b2 = se_slab_ref[2 * co_pad:2 * co_pad + 1, :]
    h2 = jnp.maximum(acc + b2, 0.0)                             # (NL, CO_PAD)

    # ---- SE block: squeeze (selector matmul) -> tiny MLP -> excite (selector) ----
    sw1 = se_slab_ref[0:co_pad, :]
    sw2 = se_slab_ref[co_pad:2 * co_pad, :]
    sb1 = se_slab_ref[2 * co_pad + 8:2 * co_pad + 9, :]
    sb2 = se_slab_ref[2 * co_pad + 16:2 * co_pad + 17, :]
    se_in = jnp.dot(ssq_ref[...], h2, preferred_element_type=jnp.float32)   # mean_t
    s1 = jnp.maximum(jnp.dot(se_in, sw1, preferred_element_type=jnp.float32) + sb1,
                     0.0)
    se = jax.nn.sigmoid(jnp.dot(s1, sw2, preferred_element_type=jnp.float32) + sb2)
    se_rows = jnp.dot(sbr_ref[...], se, preferred_element_type=jnp.float32)  # (NL, CO_PAD)

    # torch: out = mul(senet(out), out) = se * out * out ; y = relu(out + res)
    o_ref[...] = jnp.maximum(se_rows * h2 * h2 + res, 0.0)      # single unmasked store


# ---------------------------------- wrapper ----------------------------------
def temporal_block_pallas(x_ncl, torch_params, *, kernel_size, dilation, padding):
    """x_ncl: (N, C_in, L) float32, PyTorch NCL convention."""
    (W1, b1, W2, b2, Wd, bd, sw1_t, sb1, sw2_t, sb2) = torch_params
    N, C_in, L = x_ncl.shape
    K = kernel_size
    C_out = W1.shape[0]
    H = sw1_t.shape[0]
    assert padding == (K - 1) * dilation, "causal TCN block needs padding==(K-1)*dilation"
    NL = N * L
    CO_PAD = pl.cdiv(C_out, 128) * 128                 # lane-dense channel width
    NP = max(8, pl.cdiv(N, 8) * 8)                     # sublane-friendly SE rows
    f32 = jnp.float32

    # ---- input plumbing hoisted to the wrapper: im2col of x + ones column ----
    x_nlc = jnp.transpose(x_ncl, (0, 2, 1)).astype(f32)                # (N, L, C_in)
    xpad = jnp.pad(x_nlc, ((0, 0), (padding, 0), (0, 0)))              # causal left pad
    cols1 = jnp.concatenate(
        [xpad[:, k * dilation:k * dilation + L, :] for k in range(K)],
        axis=-1).reshape(NL, K * C_in)                                 # (NL, K*C_in)
    cols1a = jnp.concatenate([cols1, jnp.ones((NL, 1), f32)], axis=1)  # affine column

    # ---- fused conv1 + residual weight slab, lane-padded to CO_PAD per half ----
    KC1 = K * C_in
    w1f = jnp.transpose(W1, (2, 1, 0)).reshape(KC1, C_out)   # row k*C_in + c -> W1[o,c,k]
    wd_k = jnp.transpose(Wd[:, :, 0], (1, 0))                # (C_in, C_out)
    w_aug = jnp.zeros((KC1 + 1, 2 * CO_PAD), f32)
    w_aug = w_aug.at[:KC1, :C_out].set(w1f)                  # conv1 weight
    w_aug = w_aug.at[KC1, :C_out].set(b1)                    # conv1 bias (ones column)
    w_aug = w_aug.at[(K - 1) * C_in:KC1, CO_PAD:CO_PAD + C_out].set(wd_k)  # residual (tap K-1 = unshifted x)
    w_aug = w_aug.at[KC1, CO_PAD:CO_PAD + C_out].set(bd)     # residual bias

    # ---- conv2 per-tap weights, zero-padded to (CO_PAD, CO_PAD) ----
    w2_taps = jnp.zeros((K, CO_PAD, CO_PAD), f32)
    w2_taps = w2_taps.at[:, :C_out, :C_out].set(jnp.transpose(W2, (2, 1, 0)))

    # ---- constant causal shift+mask selectors and SE squeeze/broadcast selectors ----
    rows = jnp.arange(NL)
    t_in = rows % L                       # time index within each sample
    dsel = jnp.stack(
        [(((rows[:, None] - (padding - k * dilation)) == rows[None, :])
          & (t_in[:, None] >= (padding - k * dilation))).astype(f32)
         for k in range(K)], axis=0)                                   # (K, NL, NL)
    sid = rows // L
    ssq = jnp.zeros((NP, NL), f32).at[:N, :].set(
        (jnp.arange(N)[:, None] == sid[None, :]).astype(f32) / L)      # mean over time
    sbr = jnp.zeros((NL, NP), f32).at[:, :N].set(
        (sid[:, None] == jnp.arange(N)[None, :]).astype(f32))          # broadcast back

    # ---- SE weights + remaining biases packed into one lane-dense slab ----
    se_slab = jnp.zeros((2 * CO_PAD + 24, CO_PAD), f32)
    se_slab = se_slab.at[:C_out, :H].set(jnp.transpose(sw1_t, (1, 0)))           # sw1
    se_slab = se_slab.at[CO_PAD:CO_PAD + H, :C_out].set(jnp.transpose(sw2_t, (1, 0)))  # sw2
    se_slab = se_slab.at[2 * CO_PAD, :C_out].set(b2)                             # conv2 bias
    se_slab = se_slab.at[2 * CO_PAD + 8, :H].set(sb1)                            # SE bias 1
    se_slab = se_slab.at[2 * CO_PAD + 16, :C_out].set(sb2)                       # SE bias 2

    vmem = pl.BlockSpec(memory_space=pltpu.MemorySpace.VMEM)
    out_slab = pl.pallas_call(
        temporal_block_kernel,
        out_shape=jax.ShapeDtypeStruct((NL, CO_PAD), f32),
        in_specs=[vmem] * 7,
        out_specs=vmem,
    )(cols1a, w_aug, w2_taps, dsel, ssq, sbr, se_slab)

    out = out_slab[:, :C_out].reshape(N, L, C_out)
    return jnp.transpose(out, (0, 2, 1))                               # (N, C_out, L)


# ----------------------------- parameter setup -----------------------------
def make_params(key, C_in, C_out, K):
    ks = jax.random.split(key, 12)
    H = max(C_out // 16, 1)      # SE hidden size (=2 here)

    def wnorm(v, g):
        # PyTorch weight_norm(dim=0): W = g * v / ||v||, norm over (C_in, K) per out-ch
        nrm = jnp.sqrt(jnp.sum(v * v, axis=(1, 2), keepdims=True))
        return g[:, None, None] * v / nrm

    v1 = 0.01 * jax.random.normal(ks[0], (C_out, C_in, K), jnp.float32)
    g1 = 1.0 + 0.1 * jax.random.normal(ks[1], (C_out,), jnp.float32)
    b1 = 0.01 * jax.random.normal(ks[2], (C_out,), jnp.float32)
    v2 = 0.01 * jax.random.normal(ks[3], (C_out, C_out, K), jnp.float32)
    g2 = 1.0 + 0.1 * jax.random.normal(ks[4], (C_out,), jnp.float32)
    b2 = 0.01 * jax.random.normal(ks[5], (C_out,), jnp.float32)
    W1 = wnorm(v1, g1)
    W2 = wnorm(v2, g2)

    Wd = 0.01 * jax.random.normal(ks[6], (C_out, C_in, 1), jnp.float32)
    bd = 0.01 * jax.random.normal(ks[7], (C_out,), jnp.float32)

    # SE block MLP: Linear(C_out, H) -> ReLU -> Linear(H, C_out) -> Sigmoid
    sw1_t = 0.1 * jax.random.normal(ks[8], (H, C_out), jnp.float32)    # torch (out, in)
    sb1 = 0.1 * jax.random.normal(ks[9], (H,), jnp.float32)
    sw2_t = 0.1 * jax.random.normal(ks[10], (C_out, H), jnp.float32)
    sb2 = 0.1 * jax.random.normal(ks[11], (C_out,), jnp.float32)

    return (W1, b1, W2, b2, Wd, bd, sw1_t, sb1, sw2_t, sb2)


# ------------------------- pure-JAX reference (NCL) -------------------------
def temporal_block_ref(x, tp, *, dilation, padding):
    (W1, b1, W2, b2, Wd, bd, sw1_t, sb1, sw2_t, sb2) = tp
    dn = ("NCH", "OIH", "NCH")

    def causal_conv(y, W, b):
        y = lax.conv_general_dilated(y, W, window_strides=(1,),
                                     padding=[(padding, padding)],
                                     rhs_dilation=(dilation,),
                                     dimension_numbers=dn)
        y = y + b[None, :, None]
        y = y[:, :, :-padding]               # Chomp1d
        return jnp.maximum(y, 0.0)           # ReLU (dropout=identity in eval)

    out = causal_conv(x, W1, b1)
    out = causal_conv(out, W2, b2)
    # SEBlock, then forward does: out = senet(out) * out
    w = jnp.mean(out, axis=2)                                    # (N, C_out)
    w = jnp.maximum(w @ sw1_t.T + sb1, 0.0)
    w = jax.nn.sigmoid(w @ sw2_t.T + sb2)
    out = w[:, :, None] * out * out
    res = jnp.einsum("oc,ncl->nol", Wd[:, :, 0], x) + bd[None, :, None]
    return jnp.maximum(out + res, 0.0)


if __name__ == "__main__":
    # TemporalBlock(input_channel=4, output_channel=32, kernel_size=3,
    #               stride=1, dilation=1, padding=2, senet=True)
    N, C_in, C_out, L = 2, 4, 32, 16
    K, dilation = 3, 1
    padding = (K - 1) * dilation             # = 2, chomp restores length L

    key = jax.random.PRNGKey(0)
    kx, kp = jax.random.split(key)
    x = jax.random.normal(kx, (N, C_in, L), jnp.float32)
    torch_params = make_params(kp, C_in, C_out, K)

    out = temporal_block_pallas(x, torch_params,
                                kernel_size=K, dilation=dilation, padding=padding)
    out = jax.block_until_ready(out)

    ref = temporal_block_ref(x, torch_params, dilation=dilation, padding=padding)
    assert out.shape == (N, C_out, L)
    err = jnp.max(jnp.abs(out - ref))
    assert jnp.allclose(out, ref, atol=5e-4, rtol=5e-4), f"max abs err {err}"

    print("KERNEL_OK")
</pallas_src>

<mosaic_0001>
module attributes {stable_mosaic.version = 11 : i64} {
  func.func @temporal_block_kernel(%arg0: memref<32x13xf32, #tpu.memory_space<vmem>>, %arg1: memref<13x256xf32, #tpu.memory_space<vmem>>, %arg2: memref<3x128x128xf32, #tpu.memory_space<vmem>>, %arg3: memref<3x32x32xf32, #tpu.memory_space<vmem>>, %arg4: memref<8x32xf32, #tpu.memory_space<vmem>>, %arg5: memref<32x8xf32, #tpu.memory_space<vmem>>, %arg6: memref<280x128xf32, #tpu.memory_space<vmem>>, %arg7: memref<32x128xf32, #tpu.memory_space<vmem>>) attributes {dimension_semantics = [], scalar_prefetch = 0 : i64, scratch_operands = 0 : i64, tpu.core_type = #tpu.core_type<tc>} {
    %c0 = arith.constant 0 : index
    %c0_0 = arith.constant 0 : index
    %0 = vector.load %arg0[%c0, %c0_0] : memref<32x13xf32, #tpu.memory_space<vmem>>, vector<32x13xf32>
    %c0_1 = arith.constant 0 : index
    %c0_2 = arith.constant 0 : index
    %1 = vector.load %arg1[%c0_1, %c0_2] : memref<13x256xf32, #tpu.memory_space<vmem>>, vector<13x256xf32>
    %cst = arith.constant dense<0.000000e+00> : vector<32x256xf32>
    %2 = tpu.matmul %0, %1, %cst {dimension_numbers = #tpu.dot_dimension_numbers<[1], [0], [0], [1], [0, 0, 1, 1], [], []>} : vector<32x13xf32>, vector<13x256xf32>, vector<32x256xf32> -> vector<32x256xf32>
    %3 = vector.extract_strided_slice %2 {offsets = [0, 0], sizes = [32, 128], strides = [1, 1]} : vector<32x256xf32> to vector<32x128xf32>
    %cst_3 = arith.constant 0.000000e+00 : f32
    %4 = vector.broadcast %cst_3 : f32 to vector<32x128xf32>
    %5 = arith.maximumf %3, %4 : vector<32x128xf32>
    %6 = vector.extract_strided_slice %2 {offsets = [0, 128], sizes = [32, 128], strides = [1, 1]} : vector<32x256xf32> to vector<32x128xf32>
    %c0_4 = arith.constant 0 : index
    %c0_5 = arith.constant 0 : index
    %c0_6 = arith.constant 0 : index
    %7 = vector.load %arg3[%c0_4, %c0_5, %c0_6] : memref<3x32x32xf32, #tpu.memory_space<vmem>>, vector<1x32x32xf32>
    %8 = vector.shape_cast %7 : vector<1x32x32xf32> to vector<32x32xf32>
    %cst_7 = arith.constant dense<0.000000e+00> : vector<32x128xf32>
    %9 = tpu.matmul %8, %5, %cst_7 {dimension_numbers = #tpu.dot_dimension_numbers<[1], [0], [0], [1], [0, 0, 1, 1], [], []>} : vector<32x32xf32>, vector<32x128xf32>, vector<32x128xf32> -> vector<32x128xf32>
    %c0_8 = arith.constant 0 : index
    %c0_9 = arith.constant 0 : index
    %c0_10 = arith.constant 0 : index
    %10 = vector.load %arg2[%c0_8, %c0_9, %c0_10] : memref<3x128x128xf32, #tpu.memory_space<vmem>>, vector<1x128x128xf32>
    %11 = vector.shape_cast %10 : vector<1x128x128xf32> to vector<128x128xf32>
    %cst_11 = arith.constant dense<0.000000e+00> : vector<32x128xf32>
    %12 = tpu.matmul %9, %11, %cst_11 {dimension_numbers = #tpu.dot_dimension_numbers<[1], [0], [0], [1], [0, 0, 1, 1], [], []>} : vector<32x128xf32>, vector<128x128xf32>, vector<32x128xf32> -> vector<32x128xf32>
    %c1 = arith.constant 1 : index
    %c0_12 = arith.constant 0 : index
    %c0_13 = arith.constant 0 : index
    %13 = vector.load %arg3[%c1, %c0_12, %c0_13] : memref<3x32x32xf32, #tpu.memory_space<vmem>>, vector<1x32x32xf32>
    %14 = vector.shape_cast %13 : vector<1x32x32xf32> to vector<32x32xf32>
    %cst_14 = arith.constant dense<0.000000e+00> : vector<32x128xf32>
    %15 = tpu.matmul %14, %5, %cst_14 {dimension_numbers = #tpu.dot_dimension_numbers<[1], [0], [0], [1], [0, 0, 1, 1], [], []>} : vector<32x32xf32>, vector<32x128xf32>, vector<32x128xf32> -> vector<32x128xf32>
    %c1_15 = arith.constant 1 : index
    %c0_16 = arith.constant 0 : index
    %c0_17 = arith.constant 0 : index
    %16 = vector.load %arg2[%c1_15, %c0_16, %c0_17] : memref<3x128x128xf32, #tpu.memory_space<vmem>>, vector<1x128x128xf32>
    %17 = vector.shape_cast %16 : vector<1x128x128xf32> to vector<128x128xf32>
    %cst_18 = arith.constant dense<0.000000e+00> : vector<32x128xf32>
    %18 = tpu.matmul %15, %17, %cst_18 {dimension_numbers = #tpu.dot_dimension_numbers<[1], [0], [0], [1], [0, 0, 1, 1], [], []>} : vector<32x128xf32>, vector<128x128xf32>, vector<32x128xf32> -> vector<32x128xf32>
    %19 = arith.addf %12, %18 : vector<32x128xf32>
    %c2 = arith.constant 2 : index
    %c0_19 = arith.constant 0 : index
    %c0_20 = arith.constant 0 : index
    %20 = vector.load %arg3[%c2, %c0_19, %c0_20] : memref<3x32x32xf32, #tpu.memory_space<vmem>>, vector<1x32x32xf32>
    %21 = vector.shape_cast %20 : vector<1x32x32xf32> to vector<32x32xf32>
    %cst_21 = arith.constant dense<0.000000e+00> : vector<32x128xf32>
    %22 = tpu.matmul %21, %5, %cst_21 {dimension_numbers = #tpu.dot_dimension_numbers<[1], [0], [0], [1], [0, 0, 1, 1], [], []>} : vector<32x32xf32>, vector<32x128xf32>, vector<32x128xf32> -> vector<32x128xf32>
    %c2_22 = arith.constant 2 : index
    %c0_23 = arith.constant 0 : index
    %c0_24 = arith.constant 0 : index
    %23 = vector.load %arg2[%c2_22, %c0_23, %c0_24] : memref<3x128x128xf32, #tpu.memory_space<vmem>>, vector<1x128x128xf32>
    %24 = vector.shape_cast %23 : vector<1x128x128xf32> to vector<128x128xf32>
    %cst_25 = arith.constant dense<0.000000e+00> : vector<32x128xf32>
    %25 = tpu.matmul %22, %24, %cst_25 {dimension_numbers = #tpu.dot_dimension_numbers<[1], [0], [0], [1], [0, 0, 1, 1], [], []>} : vector<32x128xf32>, vector<128x128xf32>, vector<32x128xf32> -> vector<32x128xf32>
    %26 = arith.addf %19, %25 : vector<32x128xf32>
    %c256 = arith.constant 256 : index
    %c0_26 = arith.constant 0 : index
    %27 = vector.load %arg6[%c256, %c0_26] : memref<280x128xf32, #tpu.memory_space<vmem>>, vector<1x128xf32>
    %28 = vector.broadcast %27 : vector<1x128xf32> to vector<32x128xf32>
    %29 = arith.addf %26, %28 : vector<32x128xf32>
    %cst_27 = arith.constant 0.000000e+00 : f32
    %30 = vector.broadcast %cst_27 : f32 to vector<32x128xf32>
    %31 = arith.maximumf %29, %30 : vector<32x128xf32>
    %c0_28 = arith.constant 0 : index
    %c0_29 = arith.constant 0 : index
    %32 = vector.load %arg6[%c0_28, %c0_29] : memref<280x128xf32, #tpu.memory_space<vmem>>, vector<128x128xf32>
    %c128 = arith.constant 128 : index
    %c0_30 = arith.constant 0 : index
    %33 = vector.load %arg6[%c128, %c0_30] : memref<280x128xf32, #tpu.memory_space<vmem>>, vector<128x128xf32>
    %c264 = arith.constant 264 : index
    %c0_31 = arith.constant 0 : index
    %34 = vector.load %arg6[%c264, %c0_31] : memref<280x128xf32, #tpu.memory_space<vmem>>, vector<1x128xf32>
    %c272 = arith.constant 272 : index
    %c0_32 = arith.constant 0 : index
    %35 = vector.load %arg6[%c272, %c0_32] : memref<280x128xf32, #tpu.memory_space<vmem>>, vector<1x128xf32>
    %c0_33 = arith.constant 0 : index
    %c0_34 = arith.constant 0 : index
    %36 = vector.load %arg4[%c0_33, %c0_34] : memref<8x32xf32, #tpu.memory_space<vmem>>, vector<8x32xf32>
    %cst_35 = arith.constant dense<0.000000e+00> : vector<8x128xf32>
    %37 = tpu.matmul %36, %31, %cst_35 {dimension_numbers = #tpu.dot_dimension_numbers<[1], [0], [0], [1], [0, 0, 1, 1], [], []>} : vector<8x32xf32>, vector<32x128xf32>, vector<8x128xf32> -> vector<8x128xf32>
    %cst_36 = arith.constant dense<0.000000e+00> : vector<8x128xf32>
    %38 = tpu.matmul %37, %32, %cst_36 {dimension_numbers = #tpu.dot_dimension_numbers<[1], [0], [0], [1], [0, 0, 1, 1], [], []>} : vector<8x128xf32>, vector<128x128xf32>, vector<8x128xf32> -> vector<8x128xf32>
    %39 = vector.broadcast %34 : vector<1x128xf32> to vector<8x128xf32>
    %40 = arith.addf %38, %39 : vector<8x128xf32>
    %cst_37 = arith.constant 0.000000e+00 : f32
    %41 = vector.broadcast %cst_37 : f32 to vector<8x128xf32>
    %42 = arith.maximumf %40, %41 : vector<8x128xf32>
    %cst_38 = arith.constant dense<0.000000e+00> : vector<8x128xf32>
    %43 = tpu.matmul %42, %33, %cst_38 {dimension_numbers = #tpu.dot_dimension_numbers<[1], [0], [0], [1], [0, 0, 1, 1], [], []>} : vector<8x128xf32>, vector<128x128xf32>, vector<8x128xf32> -> vector<8x128xf32>
    %44 = vector.broadcast %35 : vector<1x128xf32> to vector<8x128xf32>
    %45 = arith.addf %43, %44 : vector<8x128xf32>
    %46 = arith.negf %45 : vector<8x128xf32>
    %47 = math.exp %46 : vector<8x128xf32>
    %cst_39 = arith.constant 1.000000e+00 : f32
    %48 = vector.broadcast %cst_39 : f32 to vector<8x128xf32>
    %49 = arith.addf %48, %47 : vector<8x128xf32>
    %50 = arith.divf %48, %49 : vector<8x128xf32>
    %c0_40 = arith.constant 0 : index
    %c0_41 = arith.constant 0 : index
    %51 = vector.load %arg5[%c0_40, %c0_41] : memref<32x8xf32, #tpu.memory_space<vmem>>, vector<32x8xf32>
    %cst_42 = arith.constant dense<0.000000e+00> : vector<32x128xf32>
    %52 = tpu.matmul %51, %50, %cst_42 {dimension_numbers = #tpu.dot_dimension_numbers<[1], [0], [0], [1], [0, 0, 1, 1], [], []>} : vector<32x8xf32>, vector<8x128xf32>, vector<32x128xf32> -> vector<32x128xf32>
    %53 = arith.mulf %52, %31 : vector<32x128xf32>
    %54 = arith.mulf %53, %31 : vector<32x128xf32>
    %55 = arith.addf %54, %6 : vector<32x128xf32>
    %cst_43 = arith.constant 0.000000e+00 : f32
    %56 = vector.broadcast %cst_43 : f32 to vector<32x128xf32>
    %57 = arith.maximumf %55, %56 : vector<32x128xf32>
    %c0_44 = arith.constant 0 : index
    %c0_45 = arith.constant 0 : index
    %58 = vector.load %arg7[%c0_44, %c0_45] : memref<32x128xf32, #tpu.memory_space<vmem>>, vector<32x128xf32>
    tpu.vector_store %arg7[%c0_44, %c0_45], %57 {strides = array<i32>} : memref<32x128xf32, #tpu.memory_space<vmem>>, vector<32x128xf32>,
    return
  }
}

</mosaic_0001>

<llo_original>
// kernel: tpu_custom_call.1
$region0: #{tpu_custom_call.1}
  #allocation0 [shape = 'u32[]', space=smem, size = 0x4, offset = 0x4, fixed_abs, tag = 'smem constant byte address 0x4 - core index']
  #allocation1 [shape = 'u32[72,128]{1,0:T(1,128)}', space=vmem, size = 0x9000, scoped, tag = 'internal scratch']
  %s0 = inlined_call_operand.vmem [shape: f32[32,13], index: 0, kind: input, shape index: {}]
  %s1 = inlined_call_operand.vmem [shape: f32[13,256], index: 1, kind: input, shape index: {}]
  %s2 = inlined_call_operand.hbm [shape: f32[3,128,128], index: 2, kind: input, shape index: {}]
  %s3 = inlined_call_operand.hbm [shape: f32[3,32,32], index: 3, kind: input, shape index: {}]
  %s4 = inlined_call_operand.vmem [shape: f32[8,32], index: 4, kind: input, shape index: {}]
  %s5 = inlined_call_operand.vmem [shape: f32[32,8], index: 5, kind: input, shape index: {}]
  %s6 = inlined_call_operand.hbm [shape: f32[280,128], index: 6, kind: input, shape index: {}]
  %s7 = inlined_call_operand.hbm [shape: f32[32,128], index: 7, kind: output, shape index: {}]
  %s8 = sld [smem:[#allocation0]]
  $region50: #{tpu_custom_call.1} parent=0
    _
  %s10 = ssub.s32 1, %s8
  %s11 = scalar_select 0, %s10, %s8
  $region1: #{tpu_custom_call.1} parent=0
    #allocation2 [shape = 'u8[196608]{0}', space=vmem, size = 0x30000, scoped, tag = 'input window, operand 2, single buffered']
    #allocation3 [shape = 's32[1]{0}', space=sflag, size = 0x4, scoped, tag = 'scoped memory for tpu_custom_call.1']
    #allocation4 [shape = 's32[1]{0}', space=sflag, size = 0x4, scoped, tag = 'scoped memory for tpu_custom_call.1']
    #allocation5 [shape = 'u8[49152]{0}', space=vmem, size = 0xc000, scoped, tag = 'input window, operand 3, single buffered']
    #allocation6 [shape = 's32[1]{0}', space=sflag, size = 0x4, scoped, tag = 'scoped memory for tpu_custom_call.1']
    #allocation7 [shape = 'u8[143360]{0}', space=vmem, size = 0x23000, scoped, tag = 'input window, operand 6, single buffered']
    #allocation8 [shape = 'u8[16384]{0}', space=vmem, size = 0x4000, scoped, tag = 'output window, operand 0, single buffered']
    %12 = vsyncpa [#allocation3], 0
    %13 = vsyncpa [#allocation6], 0
    %14 = vsyncpa [#allocation4], 0
    // Predicated region
    $region2: #{tpu_custom_call.1} parent=1 // pred_check
      _
    $region3: #{tpu_custom_call.1} parent=1 // pred_check_branch
      %16 = sbr.rel (0) target = $region5
    $region4: #{tpu_custom_call.1} parent=1 // pred_region
      _
    $region5: #{tpu_custom_call.1} parent=1 // pred_fallthru
      _
    // Predicated region
    $region6: #{tpu_custom_call.1} parent=1 // pred_check
      _
    $region7: #{tpu_custom_call.1} parent=1 // pred_check_branch
      %18 = sbr.rel (0) target = $region9
    $region8: #{tpu_custom_call.1} parent=1 // pred_region
      _
    $region9: #{tpu_custom_call.1} parent=1 // pred_fallthru
      _
    // Predicated region
    $region10: #{tpu_custom_call.1} parent=1 // pred_check
      _
    $region11: #{tpu_custom_call.1} parent=1 // pred_check_branch
      %20 = sbr.rel (0) target = $region13
    $region12: #{tpu_custom_call.1} parent=1 // pred_region
      %22 = vsyncadd [#allocation3], 0
      %s23 = sshll.u32 %s2, 4
      %s24 = int_to_ptr.hbm [resolvable:$true] %s23
      %s25 = sshll.u32 [#allocation2], 4
      %s26 = int_to_ptr.vmem [resolvable:$true] %s25
      %31 = dma.hbm_to_vmem [thread:$0]  %s24, 6144, %s26, [#allocation3], 128, 128, 8
    $region13: #{tpu_custom_call.1} parent=1 // pred_fallthru
      _
    // Predicated region
    $region14: #{tpu_custom_call.1} parent=1 // pred_check
      _
    $region15: #{tpu_custom_call.1} parent=1 // pred_check_branch
      %33 = sbr.rel (0) target = $region17
    $region16: #{tpu_custom_call.1} parent=1 // pred_region
      %35 = vsyncadd [#allocation6], 0
      %s36 = sshll.u32 %s3, 4
      %s37 = int_to_ptr.hbm [resolvable:$true] %s36
      %s38 = sshll.u32 [#allocation5], 4
      %s39 = int_to_ptr.vmem [resolvable:$true] %s38
      %44 = dma.hbm_to_vmem [thread:$0]  %s37, 1536, %s39, [#allocation6], 128, 128, 8
    $region17: #{tpu_custom_call.1} parent=1 // pred_fallthru
      _
    // Predicated region
    $region18: #{tpu_custom_call.1} parent=1 // pred_check
      _
    $region19: #{tpu_custom_call.1} parent=1 // pred_check_branch
      %46 = sbr.rel (0) target = $region21
    $region20: #{tpu_custom_call.1} parent=1 // pred_region
      _
    $region21: #{tpu_custom_call.1} parent=1 // pred_fallthru
      _
    // Predicated region
    $region22: #{tpu_custom_call.1} parent=1 // pred_check
      _
    $region23: #{tpu_custom_call.1} parent=1 // pred_check_branch
      %48 = sbr.rel (0) target = $region25
    $region24: #{tpu_custom_call.1} parent=1 // pred_region
      _
    $region25: #{tpu_custom_call.1} parent=1 // pred_fallthru
      _
    // Predicated region
    $region26: #{tpu_custom_call.1} parent=1 // pred_check
      _
    $region27: #{tpu_custom_call.1} parent=1 // pred_check_branch
      %50 = sbr.rel (0) target = $region29
    $region28: #{tpu_custom_call.1} parent=1 // pred_region
      %52 = vsyncadd [#allocation6], 0
      %s53 = sshll.u32 %s6, 4
      %s54 = int_to_ptr.hbm [resolvable:$true] %s53
      %s55 = sshll.u32 [#allocation7], 4
      %s56 = int_to_ptr.vmem [resolvable:$true] %s55
      %61 = dma.hbm_to_vmem [thread:$0]  %s54, 4480, %s56, [#allocation6], 128, 128, 8
    $region29: #{tpu_custom_call.1} parent=1 // pred_fallthru
      _
    // Predicated region
    $region30: #{tpu_custom_call.1} parent=1 // pred_check
      _
    $region31: #{tpu_custom_call.1} parent=1 // pred_check_branch
      %63 = sbr.rel (0) target = $region33
    $region32: #{tpu_custom_call.1} parent=1 // pred_region
      %65 = dma.done [#allocation3], 6144
    $region33: #{tpu_custom_call.1} parent=1 // pred_fallthru
      _
    // Predicated region
    $region34: #{tpu_custom_call.1} parent=1 // pred_check
      _
    $region35: #{tpu_custom_call.1} parent=1 // pred_check_branch
      %67 = sbr.rel (0) target = $region37
    $region36: #{tpu_custom_call.1} parent=1 // pred_region
      %69 = dma.done [#allocation6], 1536
    $region37: #{tpu_custom_call.1} parent=1 // pred_fallthru
      _
    // Predicated region
    $region38: #{tpu_custom_call.1} parent=1 // pred_check
      _
    $region39: #{tpu_custom_call.1} parent=1 // pred_check_branch
      %71 = sbr.rel (0) target = $region41
    $region40: #{tpu_custom_call.1} parent=1 // pred_region
      %73 = dma.done [#allocation6], 4480
    $region41: #{tpu_custom_call.1} parent=1 // pred_fallthru
      _
    %v74 = vld [vmem:[%s0] sm:$0xff]
    %v75 = vld [vmem:[%s0 + $0x8] sm:$0xff]
    %v76 = vld [vmem:[%s0 + $0x10] sm:$0xff]
    %v77 = vld [vmem:[%s0 + $0x18] sm:$0xff]
    %v78 = vld [vmem:[%s1] sm:$0xff]
    %v79 = vld [vmem:[%s1 + $0x8] sm:$0xff]
    %v80 = vld [vmem:[%s1 + $0x10] sm:$0x1f]
    %v81 = vld [vmem:[%s1 + $0x18] sm:$0x1f]
    %vm82 = vcmask 105472
    %v84 = vsel %vm82, %v74, 0
    %v87 = vsel %vm82, %v75, 0
    %v90 = vsel %vm82, %v76, 0
    %v93 = vsel %vm82, %v77, 0
    %vm95 = vcmask 1044480
    %v97 = vsel %vm95, %v80, 0
    %v100 = vsel %vm95, %v81, 0
    %102 = vmatpush.msra.mxu0 0.0
    %103 = vmatpush.msra.mxu0 0.0
    %104 = vmatpush.msra.mxu0 0.0
    %105 = vmatpush.msra.mxu0 0.0
    %106 = vmatpush.msra.mxu0 0.0
    %107 = vmatpush.msra.mxu0 0.0
    %108 = vmatpush.msra.mxu0 0.0
    %109 = vmatpush.msra.mxu0 0.0
    %110 = vmatpush.msra.mxu0 0.0
    %111 = vmatpush.msra.mxu0 0.0
    %112 = vmatpush.msra.mxu0 0.0
    %113 = vmatpush.msra.mxu0 0.0
    %114 = vmatpush.msra.mxu0 0.0
    %115 = vmatpush.msra.mxu0 0.0
    %116 = vmatpush.msra.mxu0 %v97
    %117 = vmatpush.msra.mxu0 %v78
    %118 = vmatmul.f32.gmra.mxu0 %v84
    %v119 = vpop.f32.mrf.mxu0
    %v120 = vadd.f32 0.0, %v119
    %121 = vmatmul.f32.gmra.mxu0 %v87
    %v122 = vpop.f32.mrf.mxu0
    %v123 = vadd.f32 0.0, %v122
    %124 = vmatmul.f32.gmra.mxu0 %v90
    %v125 = vpop.f32.mrf.mxu0
    %v126 = vadd.f32 0.0, %v125
    %127 = vmatmul.f32.gmra.mxu0 %v93
    %v128 = vpop.f32.mrf.mxu0
    %v129 = vadd.f32 0.0, %v128
    %130 = vdwg.mxu0
    %131 = vmatpush.msra.mxu0 0.0
    %132 = vmatpush.msra.mxu0 0.0
    %133 = vmatpush.msra.mxu0 0.0
    %134 = vmatpush.msra.mxu0 0.0
    %135 = vmatpush.msra.mxu0 0.0
    %136 = vmatpush.msra.mxu0 0.0
    %137 = vmatpush.msra.mxu0 0.0
    %138 = vmatpush.msra.mxu0 0.0
    %139 = vmatpush.msra.mxu0 0.0
    %140 = vmatpush.msra.mxu0 0.0
    %141 = vmatpush.msra.mxu0 0.0
    %142 = vmatpush.msra.mxu0 0.0
    %143 = vmatpush.msra.mxu0 0.0
    %144 = vmatpush.msra.mxu0 0.0
    %145 = vmatpush.msra.mxu0 %v100
    %146 = vmatpush.msra.mxu0 %v79
    %147 = vmatmul.f32.gmra.mxu0 %v84
    %v148 = vpop.f32.mrf.mxu0
    %v149 = vadd.f32 0.0, %v148
    %150 = vmatmul.f32.gmra.mxu0 %v87
    %v151 = vpop.f32.mrf.mxu0
    %v152 = vadd.f32 0.0, %v151
    %153 = vmatmul.f32.gmra.mxu0 %v90
    %v154 = vpop.f32.mrf.mxu0
    %v155 = vadd.f32 0.0, %v154
    %156 = vmatmul.f32.gmra.mxu0 %v93
    %v157 = vpop.f32.mrf.mxu0
    %v158 = vadd.f32 0.0, %v157
    %159 = vdwg.mxu0
    %v160 = vmax.f32 %v120, 0.0
    %v161 = vmax.f32 %v123, 0.0
    %v162 = vmax.f32 %v126, 0.0
    %v163 = vmax.f32 %v129, 0.0
    %v164 = vld [vmem:[#allocation5] sm:$0xff]
    %v165 = vld [vmem:[#allocation5 + $0x8] sm:$0xff]
    %v166 = vld [vmem:[#allocation5 + $0x10] sm:$0xff]
    %v167 = vld [vmem:[#allocation5 + $0x18] sm:$0xff]
    %vm168 = vcmask 261120
    %v170 = vsel %vm168, %v164, 0
    %v173 = vsel %vm168, %v165, 0
    %v176 = vsel %vm168, %v166, 0
    %v179 = vsel %vm168, %v167, 0
    %181 = vmatpush.msra.mxu0 0.0
    %182 = vmatpush.msra.mxu0 0.0
    %183 = vmatpush.msra.mxu0 0.0
    %184 = vmatpush.msra.mxu0 0.0
    %185 = vmatpush.msra.mxu0 0.0
    %186 = vmatpush.msra.mxu0 0.0
    %187 = vmatpush.msra.mxu0 0.0
    %188 = vmatpush.msra.mxu0 0.0
    %189 = vmatpush.msra.mxu0 0.0
    %190 = vmatpush.msra.mxu0 0.0
    %191 = vmatpush.msra.mxu0 0.0
    %192 = vmatpush.msra.mxu0 0.0
    %193 = vmatpush.msra.mxu0 %v163
    %194 = vmatpush.msra.mxu0 %v162
    %195 = vmatpush.msra.mxu0 %v161
    %196 = vmatpush.msra.mxu0 %v160
    %197 = vmatmul.f32.gmra.mxu0 %v170
    %v198 = vpop.f32.mrf.mxu0
    %v199 = vadd.f32 0.0, %v198
    %200 = vmatmul.f32.gmra.mxu0 %v173
    %v201 = vpop.f32.mrf.mxu0
    %v202 = vadd.f32 0.0, %v201
    %203 = vmatmul.f32.gmra.mxu0 %v176
    %v204 = vpop.f32.mrf.mxu0
    %v205 = vadd.f32 0.0, %v204
    %206 = vmatmul.f32.gmra.mxu0 %v179
    %v207 = vpop.f32.mrf.mxu0
    %v208 = vadd.f32 0.0, %v207
    %209 = vdwg.mxu0
    %v210 = vld [vmem:[#allocation2] sm:$0xff]
    %v211 = vld [vmem:[#allocation2 + $0x8] sm:$0xff]
    %v212 = vld [vmem:[#allocation2 + $0x10] sm:$0xff]
    %v213 = vld [vmem:[#allocation2 + $0x18] sm:$0xff]
    %v214 = vld [vmem:[#allocation2 + $0x20] sm:$0xff]
    %v215 = vld [vmem:[#allocation2 + $0x28] sm:$0xff]
    %v216 = vld [vmem:[#allocation2 + $0x30] sm:$0xff]
    %v217 = vld [vmem:[#allocation2 + $0x38] sm:$0xff]
    %v218 = vld [vmem:[#allocation2 + $0x40] sm:$0xff]
    %v219 = vld [vmem:[#allocation2 + $0x48] sm:$0xff]
    %v220 = vld [vmem:[#allocation2 + $0x50] sm:$0xff]
    %v221 = vld [vmem:[#allocation2 + $0x58] sm:$0xff]
    %v222 = vld [vmem:[#allocation2 + $0x60] sm:$0xff]
    %v223 = vld [vmem:[#allocation2 + $0x68] sm:$0xff]
    %v224 = vld [vmem:[#allocation2 + $0x70] sm:$0xff]
    %v225 = vld [vmem:[#allocation2 + $0x78] sm:$0xff]
    %s226 = scalar_lea.vmem [#allocation5], 32
    %v227 = vld [vmem:[%s226] sm:$0xff]
    %v228 = vld [vmem:[%s226 + $0x8] sm:$0xff]
    %v229 = vld [vmem:[%s226 + $0x10] sm:$0xff]
    %v230 = vld [vmem:[%s226 + $0x18] sm:$0xff]
    %v232 = vsel %vm168, %v227, 0
    %v235 = vsel %vm168, %v228, 0
    %v238 = vsel %vm168, %v229, 0
    %v241 = vsel %vm168, %v230, 0
    %243 = vmatpush.msra.mxu0 0.0
    %244 = vmatpush.msra.mxu0 0.0
    %245 = vmatpush.msra.mxu0 0.0
    %246 = vmatpush.msra.mxu0 0.0
    %247 = vmatpush.msra.mxu0 0.0
    %248 = vmatpush.msra.mxu0 0.0
    %249 = vmatpush.msra.mxu0 0.0
    %250 = vmatpush.msra.mxu0 0.0
    %251 = vmatpush.msra.mxu0 0.0
    %252 = vmatpush.msra.mxu0 0.0
    %253 = vmatpush.msra.mxu0 0.0
    %254 = vmatpush.msra.mxu0 0.0
    %255 = vmatpush.msra.mxu0 %v163
    %256 = vmatpush.msra.mxu0 %v162
    %257 = vmatpush.msra.mxu0 %v161
    %258 = vmatpush.msra.mxu0 %v160
    %259 = vmatmul.f32.gmra.mxu0 %v232
    %v260 = vpop.f32.mrf.mxu0
    %v261 = vadd.f32 0.0, %v260
    %262 = vmatmul.f32.gmra.mxu0 %v235
    %v263 = vpop.f32.mrf.mxu0
    %v264 = vadd.f32 0.0, %v263
    %265 = vmatmul.f32.gmra.mxu0 %v238
    %v266 = vpop.f32.mrf.mxu0
    %v267 = vadd.f32 0.0, %v266
    %268 = vmatmul.f32.gmra.mxu0 %v241
    %v269 = vpop.f32.mrf.mxu0
    %v270 = vadd.f32 0.0, %v269
    %271 = vdwg.mxu0
    %s272 = scalar_lea.vmem [#allocation2], 128
    %v273 = vld [vmem:[%s272] sm:$0xff]
    %v274 = vld [vmem:[%s272 + $0x8] sm:$0xff]
    %v275 = vld [vmem:[%s272 + $0x10] sm:$0xff]
    %v276 = vld [vmem:[%s272 + $0x18] sm:$0xff]
    %v277 = vld [vmem:[%s272 + $0x20] sm:$0xff]
    %v278 = vld [vmem:[%s272 + $0x28] sm:$0xff]
    %v279 = vld [vmem:[%s272 + $0x30] sm:$0xff]
    %v280 = vld [vmem:[%s272 + $0x38] sm:$0xff]
    %v281 = vld [vmem:[%s272 + $0x40] sm:$0xff]
    %v282 = vld [vmem:[%s272 + $0x48] sm:$0xff]
    %v283 = vld [vmem:[%s272 + $0x50] sm:$0xff]
    %v284 = vld [vmem:[%s272 + $0x58] sm:$0xff]
    %v285 = vld [vmem:[%s272 + $0x60] sm:$0xff]
    %v286 = vld [vmem:[%s272 + $0x68] sm:$0xff]
    %v287 = vld [vmem:[%s272 + $0x70] sm:$0xff]
    %v288 = vld [vmem:[%s272 + $0x78] sm:$0xff]
    %289 = vmatpush.msra.mxu0 %v288
    %290 = vmatpush.msra.mxu0 %v287
    %291 = vmatpush.msra.mxu0 %v286
    %292 = vmatpush.msra.mxu0 %v285
    %293 = vmatpush.msra.mxu0 %v284
    %294 = vmatpush.msra.mxu0 %v283
    %295 = vmatpush.msra.mxu0 %v282
    %296 = vmatpush.msra.mxu0 %v281
    %297 = vmatpush.msra.mxu0 %v280
    %298 = vmatpush.msra.mxu0 %v279
    %299 = vmatpush.msra.mxu0 %v278
    %300 = vmatpush.msra.mxu0 %v277
    %301 = vmatpush.msra.mxu0 %v276
    %302 = vmatpush.msra.mxu0 %v275
    %303 = vmatpush.msra.mxu0 %v274
    %304 = vmatpush.msra.mxu0 %v273
    %305 = vmatmul.f32.gmra.mxu0 %v261
    %v306 = vpop.f32.mrf.mxu0
    %v307 = vadd.f32 0.0, %v306
    %308 = vmatmul.f32.gmra.mxu0 %v264
    %v309 = vpop.f32.mrf.mxu0
    %v310 = vadd.f32 0.0, %v309
    %311 = vmatmul.f32.gmra.mxu0 %v267
    %v312 = vpop.f32.mrf.mxu0
    %v313 = vadd.f32 0.0, %v312
    %314 = vmatmul.f32.gmra.mxu0 %v270
    %v315 = vpop.f32.mrf.mxu0
    %v316 = vadd.f32 0.0, %v315
    %317 = vdwg.mxu0
    %318 = vmatpush.msra.mxu0 %v225
    %319 = vmatpush.msra.mxu0 %v224
    %320 = vmatpush.msra.mxu0 %v223
    %321 = vmatpush.msra.mxu0 %v222
    %322 = vmatpush.msra.mxu0 %v221
    %323 = vmatpush.msra.mxu0 %v220
    %324 = vmatpush.msra.mxu0 %v219
    %325 = vmatpush.msra.mxu0 %v218
    %326 = vmatpush.msra.mxu0 %v217
    %327 = vmatpush.msra.mxu0 %v216
    %328 = vmatpush.msra.mxu0 %v215
    %329 = vmatpush.msra.mxu0 %v214
    %330 = vmatpush.msra.mxu0 %v213
    %331 = vmatpush.msra.mxu0 %v212
    %332 = vmatpush.msra.mxu0 %v211
    %333 = vmatpush.msra.mxu0 %v210
    %334 = vmatmul.f32.gmra.mxu0 %v199
    %v335 = vpop.f32.mrf.mxu0
    %v336 = vadd.f32 %v307, %v335
    %337 = vmatmul.f32.gmra.mxu0 %v202
    %v338 = vpop.f32.mrf.mxu0
    %v339 = vadd.f32 %v310, %v338
    %340 = vmatmul.f32.gmra.mxu0 %v205
    %v341 = vpop.f32.mrf.mxu0
    %v342 = vadd.f32 %v313, %v341
    %343 = vmatmul.f32.gmra.mxu0 %v208
    %v344 = vpop.f32.mrf.mxu0
    %v345 = vadd.f32 %v316, %v344
    %346 = vdwg.mxu0
    %s347 = scalar_lea.vmem [#allocation5], 64
    %v348 = vld [vmem:[%s347] sm:$0xff]
    %v349 = vld [vmem:[%s347 + $0x8] sm:$0xff]
    %v350 = vld [vmem:[%s347 + $0x10] sm:$0xff]
    %v351 = vld [vmem:[%s347 + $0x18] sm:$0xff]
    %v353 = vsel %vm168, %v348, 0
    %v356 = vsel %vm168, %v349, 0
    %v359 = vsel %vm168, %v350, 0
    %v362 = vsel %vm168, %v351, 0
    %364 = vmatpush.msra.mxu0 0.0
    %365 = vmatpush.msra.mxu0 0.0
    %366 = vmatpush.msra.mxu0 0.0
    %367 = vmatpush.msra.mxu0 0.0
    %368 = vmatpush.msra.mxu0 0.0
    %369 = vmatpush.msra.mxu0 0.0
    %370 = vmatpush.msra.mxu0 0.0
    %371 = vmatpush.msra.mxu0 0.0
    %372 = vmatpush.msra.mxu0 0.0
    %373 = vmatpush.msra.mxu0 0.0
    %374 = vmatpush.msra.mxu0 0.0
    %375 = vmatpush.msra.mxu0 0.0
    %376 = vmatpush.msra.mxu0 %v163
    %377 = vmatpush.msra.mxu0 %v162
    %378 = vmatpush.msra.mxu0 %v161
    %379 = vmatpush.msra.mxu0 %v160
    %380 = vmatmul.f32.gmra.mxu0 %v353
    %v381 = vpop.f32.mrf.mxu0
    %v382 = vadd.f32 0.0, %v381
    %383 = vmatmul.f32.gmra.mxu0 %v356
    %v384 = vpop.f32.mrf.mxu0
    %v385 = vadd.f32 0.0, %v384
    %386 = vmatmul.f32.gmra.mxu0 %v359
    %v387 = vpop.f32.mrf.mxu0
    %v388 = vadd.f32 0.0, %v387
    %389 = vmatmul.f32.gmra.mxu0 %v362
    %v390 = vpop.f32.mrf.mxu0
    %v391 = vadd.f32 0.0, %v390
    %392 = vdwg.mxu0
    %s393 = scalar_lea.vmem [#allocation2], 256
    %v394 = vld [vmem:[%s393] sm:$0xff]
    %v395 = vld [vmem:[%s393 + $0x8] sm:$0xff]
    %v396 = vld [vmem:[%s393 + $0x10] sm:$0xff]
    %v397 = vld [vmem:[%s393 + $0x18] sm:$0xff]
    %v398 = vld [vmem:[%s393 + $0x20] sm:$0xff]
    %v399 = vld [vmem:[%s393 + $0x28] sm:$0xff]
    %v400 = vld [vmem:[%s393 + $0x30] sm:$0xff]
    %v401 = vld [vmem:[%s393 + $0x38] sm:$0xff]
    %v402 = vld [vmem:[%s393 + $0x40] sm:$0xff]
    %v403 = vld [vmem:[%s393 + $0x48] sm:$0xff]
    %v404 = vld [vmem:[%s393 + $0x50] sm:$0xff]
    %v405 = vld [vmem:[%s393 + $0x58] sm:$0xff]
    %v406 = vld [vmem:[%s393 + $0x60] sm:$0xff]
    %v407 = vld [vmem:[%s393 + $0x68] sm:$0xff]
    %v408 = vld [vmem:[%s393 + $0x70] sm:$0xff]
    %v409 = vld [vmem:[%s393 + $0x78] sm:$0xff]
    %410 = vmatpush.msra.mxu0 %v409
    %411 = vmatpush.msra.mxu0 %v408
    %412 = vmatpush.msra.mxu0 %v407
    %413 = vmatpush.msra.mxu0 %v406
    %414 = vmatpush.msra.mxu0 %v405
    %415 = vmatpush.msra.mxu0 %v404
    %416 = vmatpush.msra.mxu0 %v403
    %417 = vmatpush.msra.mxu0 %v402
    %418 = vmatpush.msra.mxu0 %v401
    %419 = vmatpush.msra.mxu0 %v400
    %420 = vmatpush.msra.mxu0 %v399
    %421 = vmatpush.msra.mxu0 %v398
    %422 = vmatpush.msra.mxu0 %v397
    %423 = vmatpush.msra.mxu0 %v396
    %424 = vmatpush.msra.mxu0 %v395
    %425 = vmatpush.msra.mxu0 %v394
    %426 = vmatmul.f32.gmra.mxu0 %v382
    %v427 = vpop.f32.mrf.mxu0
    %v428 = vadd.f32 0.0, %v427
    %429 = vmatmul.f32.gmra.mxu0 %v385
    %v430 = vpop.f32.mrf.mxu0
    %v431 = vadd.f32 0.0, %v430
    %432 = vmatmul.f32.gmra.mxu0 %v388
    %v433 = vpop.f32.mrf.mxu0
    %v434 = vadd.f32 0.0, %v433
    %435 = vmatmul.f32.gmra.mxu0 %v391
    %v436 = vpop.f32.mrf.mxu0
    %v437 = vadd.f32 0.0, %v436
    %438 = vdwg.mxu0
    %v439 = vadd.f32 %v336, %v428
    %v440 = vadd.f32 %v339, %v431
    %v441 = vadd.f32 %v342, %v434
    %v442 = vadd.f32 %v345, %v437
    %v443 = vld [vmem:[#allocation7 + $0x100] sm:$0x1]
    %v444 = vperm.slane %v443, 0
    %v445 = vadd.f32 %v439, %v444
    %v446 = vadd.f32 %v440, %v444
    %v447 = vadd.f32 %v441, %v444
    %v448 = vadd.f32 %v442, %v444
    %v449 = vmax.f32 %v445, 0.0
    %v450 = vmax.f32 %v446, 0.0
    %v451 = vmax.f32 %v447, 0.0
    %v452 = vmax.f32 %v448, 0.0
    %v453 = vld [vmem:[#allocation7] sm:$0xff]
    %v454 = vld [vmem:[#allocation7 + $0x8] sm:$0xff]
    %v455 = vld [vmem:[#allocation7 + $0x10] sm:$0xff]
    %v456 = vld [vmem:[#allocation7 + $0x18] sm:$0xff]
    %v457 = vld [vmem:[#allocation7 + $0x20] sm:$0xff]
    %v458 = vld [vmem:[#allocation7 + $0x28] sm:$0xff]
    %v459 = vld [vmem:[#allocation7 + $0x30] sm:$0xff]
    %v460 = vld [vmem:[#allocation7 + $0x38] sm:$0xff]
    %v461 = vld [vmem:[#allocation7 + $0x40] sm:$0xff]
    %v462 = vld [vmem:[#allocation7 + $0x48] sm:$0xff]
    %v463 = vld [vmem:[#allocation7 + $0x50] sm:$0xff]
    %v464 = vld [vmem:[#allocation7 + $0x58] sm:$0xff]
    %v465 = vld [vmem:[#allocation7 + $0x60] sm:$0xff]
    %v466 = vld [vmem:[#allocation7 + $0x68] sm:$0xff]
    %v467 = vld [vmem:[#allocation7 + $0x70] sm:$0xff]
    %v468 = vld [vmem:[#allocation7 + $0x78] sm:$0xff]
    %v469 = vld [vmem:[#allocation7 + $0x80] sm:$0xff]
    %v470 = vld [vmem:[#allocation7 + $0x88] sm:$0xff]
    %v471 = vld [vmem:[#allocation7 + $0x90] sm:$0xff]
    %v472 = vld [vmem:[#allocation7 + $0x98] sm:$0xff]
    %v473 = vld [vmem:[#allocation7 + $0xa0] sm:$0xff]
    %v474 = vld [vmem:[#allocation7 + $0xa8] sm:$0xff]
    %v475 = vld [vmem:[#allocation7 + $0xb0] sm:$0xff]
    %v476 = vld [vmem:[#allocation7 + $0xb8] sm:$0xff]
    %v477 = vld [vmem:[#allocation7 + $0xc0] sm:$0xff]
    %v478 = vld [vmem:[#allocation7 + $0xc8] sm:$0xff]
    %v479 = vld [vmem:[#allocation7 + $0xd0] sm:$0xff]
    %v480 = vld [vmem:[#allocation7 + $0xd8] sm:$0xff]
    %v481 = vld [vmem:[#allocation7 + $0xe0] sm:$0xff]
    %v482 = vld [vmem:[#allocation7 + $0xe8] sm:$0xff]
    %v483 = vld [vmem:[#allocation7 + $0xf0] sm:$0xff]
    %v484 = vld [vmem:[#allocation7 + $0xf8] sm:$0xff]
    %v485 = vld [vmem:[#allocation7 + $0x108] sm:$0x1]
    %v486 = vld [vmem:[#allocation7 + $0x110] sm:$0x1]
    %v487 = vld [vmem:[%s4] sm:$0xff]
    %v489 = vsel %vm168, %v487, 0
    %491 = vmatpush.msra.mxu0 0.0
    %492 = vmatpush.msra.mxu0 0.0
    %493 = vmatpush.msra.mxu0 0.0
    %494 = vmatpush.msra.mxu0 0.0
    %495 = vmatpush.msra.mxu0 0.0
    %496 = vmatpush.msra.mxu0 0.0
    %497 = vmatpush.msra.mxu0 0.0
    %498 = vmatpush.msra.mxu0 0.0
    %499 = vmatpush.msra.mxu0 0.0
    %500 = vmatpush.msra.mxu0 0.0
    %501 = vmatpush.msra.mxu0 0.0
    %502 = vmatpush.msra.mxu0 0.0
    %503 = vmatpush.msra.mxu0 %v452
    %504 = vmatpush.msra.mxu0 %v451
    %505 = vmatpush.msra.mxu0 %v450
    %506 = vmatpush.msra.mxu0 %v449
    %507 = vmatmul.f32.gmra.mxu0 %v489
    %v508 = vpop.f32.mrf.mxu0
    %v509 = vadd.f32 0.0, %v508
    %510 = vdwg.mxu0
    %v511 = vperm.slane %v485, 0
    %512 = vmatpush.msra.mxu0 %v468
    %513 = vmatpush.msra.mxu0 %v467
    %514 = vmatpush.msra.mxu0 %v466
    %515 = vmatpush.msra.mxu0 %v465
    %516 = vmatpush.msra.mxu0 %v464
    %517 = vmatpush.msra.mxu0 %v463
    %518 = vmatpush.msra.mxu0 %v462
    %519 = vmatpush.msra.mxu0 %v461
    %520 = vmatpush.msra.mxu0 %v460
    %521 = vmatpush.msra.mxu0 %v459
    %522 = vmatpush.msra.mxu0 %v458
    %523 = vmatpush.msra.mxu0 %v457
    %524 = vmatpush.msra.mxu0 %v456
    %525 = vmatpush.msra.mxu0 %v455
    %526 = vmatpush.msra.mxu0 %v454
    %527 = vmatpush.msra.mxu0 %v453
    %528 = vmatmul.f32.gmra.mxu0 %v509
    %v529 = vpop.f32.mrf.mxu0
    %v530 = vadd.f32 %v511, %v529
    %531 = vdwg.mxu0
    %v532 = vmax.f32 %v530, 0.0
    %v533 = vperm.slane %v486, 0
    %534 = vmatpush.msra.mxu0 %v484
    %535 = vmatpush.msra.mxu0 %v483
    %536 = vmatpush.msra.mxu0 %v482
    %537 = vmatpush.msra.mxu0 %v481
    %538 = vmatpush.msra.mxu0 %v480
    %539 = vmatpush.msra.mxu0 %v479
    %540 = vmatpush.msra.mxu0 %v478
    %541 = vmatpush.msra.mxu0 %v477
    %542 = vmatpush.msra.mxu0 %v476
    %543 = vmatpush.msra.mxu0 %v475
    %544 = vmatpush.msra.mxu0 %v474
    %545 = vmatpush.msra.mxu0 %v473
    %546 = vmatpush.msra.mxu0 %v472
    %547 = vmatpush.msra.mxu0 %v471
    %548 = vmatpush.msra.mxu0 %v470
    %549 = vmatpush.msra.mxu0 %v469
    %550 = vmatmul.f32.gmra.mxu0 %v532
    %v551 = vpop.f32.mrf.mxu0
    %v552 = vadd.f32 %v533, %v551
    %553 = vdwg.mxu0
    %v554 = vxor.u32 %v552, 2147483648
    %v555 = vmul.f32 %v554, 1.442695
    %v556 = vpow.pop %v555
    %v557 = vadd.f32 %v556, 1.0
    %v558 = vrcp.pop %v557
    %v559 = vmul.f32 %v557, %v558
    %v560 = vsub.f32 1.0, %v559
    %v561 = vmul.f32 %v558, %v560
    %v562 = vadd.f32 %v558, %v561
    %vm563 = vweird.f32 %v557
    %vm564 = vweird.f32 %v558
    %vm565 = vmor %vm563, %vm564
    %v566 = vsel %vm565, %v558, %v562
    %v567 = vand.u32 2147483647, %v557
    %vm568 = vcmp.eq.f32.partialorder %v567, 8.507059e+37
    %v569 = vand.u32 %v557, 2147483648
    %v570 = vor.u32 1.1754944e-38, %v569
    %v571 = vsel %vm568, %v570, %v566
    %v572 = vmul.f32 1.0, %v571
    %v573 = vld [vmem:[%s5] sm:$0xff]
    %v574 = vld [vmem:[%s5 + $0x8] sm:$0xff]
    %v575 = vld [vmem:[%s5 + $0x10] sm:$0xff]
    %v576 = vld [vmem:[%s5 + $0x18] sm:$0xff]
    %vm577 = vcmask 64512
    %v579 = vsel %vm577, %v573, 0
    %v582 = vsel %vm577, %v574, 0
    %v585 = vsel %vm577, %v575, 0
    %v588 = vsel %vm577, %v576, 0
    %590 = vmatpush.msra.mxu0 0.0
    %591 = vmatpush.msra.mxu0 0.0
    %592 = vmatpush.msra.mxu0 0.0
    %593 = vmatpush.msra.mxu0 0.0
    %594 = vmatpush.msra.mxu0 0.0
    %595 = vmatpush.msra.mxu0 0.0
    %596 = vmatpush.msra.mxu0 0.0
    %597 = vmatpush.msra.mxu0 0.0
    %598 = vmatpush.msra.mxu0 0.0
    %599 = vmatpush.msra.mxu0 0.0
    %600 = vmatpush.msra.mxu0 0.0
    %601 = vmatpush.msra.mxu0 0.0
    %602 = vmatpush.msra.mxu0 0.0
    %603 = vmatpush.msra.mxu0 0.0
    %604 = vmatpush.msra.mxu0 0.0
    %605 = vmatpush.msra.mxu0 %v572
    %606 = vmatmul.f32.gmra.mxu0 %v579
    %v607 = vpop.f32.mrf.mxu0
    %v608 = vadd.f32 0.0, %v607
    %609 = vmatmul.f32.gmra.mxu0 %v582
    %v610 = vpop.f32.mrf.mxu0
    %v611 = vadd.f32 0.0, %v610
    %612 = vmatmul.f32.gmra.mxu0 %v585
    %v613 = vpop.f32.mrf.mxu0
    %v614 = vadd.f32 0.0, %v613
    %615 = vmatmul.f32.gmra.mxu0 %v588
    %v616 = vpop.f32.mrf.mxu0
    %v617 = vadd.f32 0.0, %v616
    %618 = vdwg.mxu0
    %v619 = vmul.f32 %v608, %v449
    %v620 = vmul.f32 %v611, %v450
    %v621 = vmul.f32 %v614, %v451
    %v622 = vmul.f32 %v617, %v452
    %v623 = vmul.f32 %v619, %v449
    %v624 = vmul.f32 %v620, %v450
    %v625 = vmul.f32 %v621, %v451
    %v626 = vmul.f32 %v622, %v452
    %v627 = vadd.f32 %v623, %v149
    %v628 = vadd.f32 %v624, %v152
    %v629 = vadd.f32 %v625, %v155
    %v630 = vadd.f32 %v626, %v158
    %v631 = vmax.f32 %v627, 0.0
    %v632 = vmax.f32 %v628, 0.0
    %v633 = vmax.f32 %v629, 0.0
    %v634 = vmax.f32 %v630, 0.0
    %635 = vst [vmem:[#allocation8] sm:$0xff] %v631
    %636 = vst [vmem:[#allocation8 + $0x8] sm:$0xff] %v632
    %637 = vst [vmem:[#allocation8 + $0x10] sm:$0xff] %v633
    %638 = vst [vmem:[#allocation8 + $0x18] sm:$0xff] %v634
    // Predicated region
    $region42: #{tpu_custom_call.1} parent=1 // pred_check
      _
    $region43: #{tpu_custom_call.1} parent=1 // pred_check_branch
      %640 = sbr.rel (0) target = $region45
    $region44: #{tpu_custom_call.1} parent=1 // pred_region
      %642 = vsyncadd [#allocation4], 0
      %s643 = sshll.u32 [#allocation8], 4
      %s644 = int_to_ptr.vmem [resolvable:$true] %s643
      %s645 = sshll.u32 %s7, 4
      %s646 = int_to_ptr.hbm [resolvable:$true] %s645
      %651 = dma.vmem_to_hbm [thread:$0]  %s644, 512, %s646, [#allocation4], 128, 128, 8
    $region45: #{tpu_custom_call.1} parent=1 // pred_fallthru
      _
    // Predicated region
    $region46: #{tpu_custom_call.1} parent=1 // pred_check
      _
    $region47: #{tpu_custom_call.1} parent=1 // pred_check_branch
      %653 = sbr.rel (0) target = $region49
    $region48: #{tpu_custom_call.1} parent=1 // pred_region
      %655 = dma.done [#allocation4], 512
    $region49: #{tpu_custom_call.1} parent=1 // pred_fallthru
      _
    %656 = vsyncpa [#allocation3], 1
    %657 = vsyncpa [#allocation6], 1
    %658 = vsyncpa [#allocation4], 1

</llo_original>
